<compile_context>
chip_gen: v5e
topology: v5e:2x2
jax: 0.10.0
libtpu: 0.0.40
codegen_flags: <defaults>
</compile_context>

<pallas_src>
import jax
import jax.numpy as jnp
from jax.experimental import pallas as pl
from jax.experimental.pallas import tpu as pltpu

BN_EPS = 1e-5
SLAB_LANES = 256   # lane width of the packed weight slab (max layer fan-out)
VEC_PAD = 256      # lane width of the packed small-vector slab
OUT_PAD = 128      # lane-dense padded width of layer-5 output / final store
H4_PAD = 128       # padded width of the 64-wide hidden layer


def _ceil_to(x, m):
    return -(-x // m) * m


def _pad2d(a, rows, cols):
    return jnp.pad(a, ((0, rows - a.shape[0]), (0, cols - a.shape[1])))


def pack_params(params):
    """Pack PyTorch-style flat params
         [w1,b1,g1,be1, w2,b2,g2,be2, w3,b3,g3,be3, w4,b4,g4,be4, w5,b5]
       (weights stored (in, out)) into persistent device slabs.

       Returns (w_slab_bf16, vec_slab_f32, layout, action_size):
         * w_slab : (K_total, 256) bf16 — all 5 weight matrices, each starting at
                    a 16-sublane-aligned row, zero-padded to a lane-dense fan-out.
         * vec_slab: (9, 256) f32 rows [g1,be1,g2,be2,g3,be3,g4,be4,b5].
         * layout : static tuple of (row_offset, K, N_padded) per layer.
       Call ONCE (e.g. at policy load) and reuse the results for every forward
       call in the rollout loop.  Pre-BN biases b1..b4 are dropped: train-mode
       BatchNorm subtracts the batch mean immediately, so they cancel exactly.
    """
    n_pad = (128, 256, 128, H4_PAD)          # lane-dense fan-out per BN layer
    ws, vec_rows = [], []
    idx = 0
    for li in range(4):
        w, _b, g, be = params[idx:idx + 4]   # pre-BN bias _b is dropped
        idx += 4
        ws.append(_pad2d(w.astype(jnp.float32), w.shape[0], n_pad[li]))
        vec_rows.append(_pad2d(g.astype(jnp.float32), 1, VEC_PAD))   # pad gamma=0
        vec_rows.append(_pad2d(be.astype(jnp.float32), 1, VEC_PAD))  # pad beta =0
    w5, b5 = params[idx], params[idx + 1]
    action_size = int(w5.shape[1])
    ws.append(_pad2d(w5.astype(jnp.float32), H4_PAD, OUT_PAD))       # zero rows/cols
    vec_rows.append(_pad2d(b5.astype(jnp.float32), 1, VEC_PAD))

    layout, blocks, row = [], [], 0
    for w in ws:
        k, n = int(w.shape[0]), int(w.shape[1])
        k_slab = _ceil_to(k, 16)             # 16-row alignment for bf16 (16,128) tiles
        blocks.append(_pad2d(w, k_slab, SLAB_LANES))
        layout.append((row, k, n))
        row += k_slab
    w_slab = jnp.concatenate(blocks, axis=0).astype(jnp.bfloat16)
    vec_slab = jnp.concatenate(vec_rows, axis=0)                     # (9, 256) f32
    return w_slab, vec_slab, tuple(layout), action_size


def build_forward(layout):
    """Specialize the kernel to a static weight-slab layout.

    Returns forward(x, w_slab, vec_slab) -> (B, OUT_PAD) f32 padded Q-values;
    the consumer indexes [:, :action_size] (columns beyond it are exactly 0).
    """

    def kernel(x_ref, w_ref, vec_ref, out_ref):
        h = x_ref[...].astype(jnp.float32)
        inv_b = 1.0 / h.shape[0]
        for li in range(4):   # Linear -> BatchNorm1d(train) -> ReLU, fused + unrolled
            r0, k, n = layout[li]
            w = w_ref[r0:r0 + k, 0:n]                         # static bf16 view
            h = jnp.dot(h.astype(jnp.bfloat16), w,
                        preferred_element_type=jnp.float32)   # f32 accumulate
            # One-pass batch stats (biased variance, as in PyTorch BN forward).
            s = jnp.sum(h, axis=0, keepdims=True)
            ss = jnp.sum(h * h, axis=0, keepdims=True)
            mean = s * inv_b
            var = jnp.maximum(ss * inv_b - mean * mean, 0.0)  # guard f32 cancellation
            gamma = vec_ref[2 * li:2 * li + 1, 0:n]
            beta = vec_ref[2 * li + 1:2 * li + 2, 0:n]
            scale = gamma * jax.lax.rsqrt(var + BN_EPS)
            shift = beta - mean * scale
            h = jnp.maximum(h * scale + shift, 0.0)
        r0, k, n = layout[4]
        w5 = w_ref[r0:r0 + k, 0:n]
        b5 = vec_ref[8:9, 0:n]
        out_ref[...] = (jnp.dot(h.astype(jnp.bfloat16), w5,
                                preferred_element_type=jnp.float32) + b5
                        ).astype(out_ref.dtype)

    def forward(x, w_slab, vec_slab):
        batch = x.shape[0]
        flops = 2 * batch * sum(k * n for _, k, n in layout)
        bn_lanes = sum(n for _, _, n in layout[:4])           # rsqrt lane count
        bytes_accessed = int(x.size * x.dtype.itemsize
                             + w_slab.size * w_slab.dtype.itemsize
                             + vec_slab.size * vec_slab.dtype.itemsize
                             + batch * OUT_PAD * 4)
        vmem = pl.BlockSpec(memory_space=pltpu.MemorySpace.VMEM)
        # Single block => BN statistics are full-batch, matching PyTorch train
        # mode.  On v7x a ("parallel",) batch grid would engage the 2nd
        # TensorCore, but only along an axis where BN stats stay local
        # (independent nets / env groups); intentionally not done here.
        return pl.pallas_call(
            kernel,
            out_shape=jax.ShapeDtypeStruct((batch, OUT_PAD), jnp.float32),
            in_specs=[vmem, vmem, vmem],
            out_specs=vmem,
            cost_estimate=pl.CostEstimate(flops=flops,
                                          transcendentals=bn_lanes,
                                          bytes_accessed=bytes_accessed),
        )(x, w_slab, vec_slab)

    return forward


def init_params(key, m_agents, p_preys, action_size):
    """Deterministic init mimicking PyTorch defaults.
    Linear: U(-1/sqrt(fan_in), 1/sqrt(fan_in)) for weight and bias.
    BatchNorm1d: gamma = 1, beta = 0.  Weights stored (in, out)."""
    state_dims = (m_agents + p_preys) * 2 + p_preys
    input_dims = state_dims + m_agents + m_agents * action_size

    layer_dims = [(input_dims, 128), (128, 256), (256, 128), (128, 64), (64, action_size)]

    params = []
    for li, (fan_in, fan_out) in enumerate(layer_dims):
        key, kw, kb = jax.random.split(key, 3)
        bound = 1.0 / jnp.sqrt(jnp.float32(fan_in))
        w = jax.random.uniform(kw, (fan_in, fan_out), jnp.float32, -bound, bound)
        b = jax.random.uniform(kb, (1, fan_out), jnp.float32, -bound, bound)
        params.append(w)
        params.append(b)
        if li < 4:  # BN after the first 4 linears
            params.append(jnp.ones((1, fan_out), jnp.float32))   # gamma
            params.append(jnp.zeros((1, fan_out), jnp.float32))  # beta
    return input_dims, params


def reference_forward(x, params, matmul_dtype=jnp.float32):
    """Pure-JAX reference with the original PyTorch formulation: pre-BN biases
    included, two-pass mean/var, unfused BN.  `matmul_dtype=jnp.bfloat16`
    emulates the kernel's matmul operand precision (accumulation stays f32)."""
    h = x
    idx = 0
    for _ in range(4):
        w, b, g, be = params[idx], params[idx + 1], params[idx + 2], params[idx + 3]
        idx += 4
        h = jnp.dot(h.astype(matmul_dtype), w.astype(matmul_dtype),
                    preferred_element_type=jnp.float32) + b
        mean = jnp.mean(h, axis=0, keepdims=True)
        var = jnp.mean((h - mean) ** 2, axis=0, keepdims=True)
        h = (h - mean) * jax.lax.rsqrt(var + BN_EPS) * g + be
        h = jnp.maximum(h, 0.0)
    w5, b5 = params[idx], params[idx + 1]
    return jnp.dot(h.astype(matmul_dtype), w5.astype(matmul_dtype),
                   preferred_element_type=jnp.float32) + b5


if __name__ == "__main__":
    m_agents, p_preys, action_size = 2, 2, 4
    batch = 8  # NOTE: throughput knob — fuse many env states per call in real use.

    key = jax.random.PRNGKey(0)
    key, kx = jax.random.split(key)
    input_dims, params = init_params(key, m_agents, p_preys, action_size)
    x = jax.random.normal(kx, (batch, input_dims), jnp.float32)

    # Pack ONCE; reuse the slabs and the layout-specialized forward for every call.
    w_slab, vec_slab, layout, a_size = pack_params(params)
    forward = build_forward(layout)

    out_padded = jax.block_until_ready(forward(x, w_slab, vec_slab))
    out = out_padded[:, :a_size]

    # Correctness: compare against the unfused, biased, two-pass-BN reference
    # run at matched matmul operand precision (bf16 operands, f32 accumulate).
    ref = reference_forward(x, params, matmul_dtype=jnp.bfloat16)
    assert out.shape == (batch, action_size)
    assert bool(jnp.all(jnp.isfinite(out_padded)))
    assert jnp.allclose(out_padded[:, a_size:], 0.0, atol=1e-5)   # lane padding is inert
    assert jnp.allclose(out, ref, atol=3e-2, rtol=3e-2), "mismatch vs reference"

    print("KERNEL_OK")
</pallas_src>

<mosaic_0001>
module attributes {stable_mosaic.version = 11 : i64} {
  func.func @kernel(%arg0: memref<8x20xf32, #tpu.memory_space<vmem>>, %arg1: memref<672x256xbf16, #tpu.memory_space<vmem>>, %arg2: memref<9x256xf32, #tpu.memory_space<vmem>>, %arg3: memref<8x128xf32, #tpu.memory_space<vmem>>) attributes {dimension_semantics = [], scalar_prefetch = 0 : i64, scratch_operands = 0 : i64, tpu.core_type = #tpu.core_type<tc>} {
    %c0 = arith.constant 0 : index
    %c0_0 = arith.constant 0 : index
    %0 = vector.load %arg0[%c0, %c0_0] : memref<8x20xf32, #tpu.memory_space<vmem>>, vector<8x20xf32>
    %c0_1 = arith.constant 0 : index
    %c0_2 = arith.constant 0 : index
    %1 = vector.load %arg1[%c0_1, %c0_2] : memref<672x256xbf16, #tpu.memory_space<vmem>>, vector<20x128xbf16>
    %2 = arith.truncf %0 : vector<8x20xf32> to vector<8x20xbf16>
    %cst = arith.constant dense<0.000000e+00> : vector<8x128xf32>
    %3 = tpu.matmul %2, %1, %cst {dimension_numbers = #tpu.dot_dimension_numbers<[1], [0], [0], [1], [0, 0, 1, 1], [], []>} : vector<8x20xbf16>, vector<20x128xbf16>, vector<8x128xf32> -> vector<8x128xf32>
    %cst_3 = arith.constant dense<0.000000e+00> : vector<128xf32>
    %4 = vector.multi_reduction <add>, %3, %cst_3 [0] : vector<8x128xf32> to vector<128xf32>
    %5 = vector.shape_cast %4 : vector<128xf32> to vector<1x128xf32>
    %6 = arith.mulf %3, %3 : vector<8x128xf32>
    %cst_4 = arith.constant dense<0.000000e+00> : vector<128xf32>
    %7 = vector.multi_reduction <add>, %6, %cst_4 [0] : vector<8x128xf32> to vector<128xf32>
    %8 = vector.shape_cast %7 : vector<128xf32> to vector<1x128xf32>
    %cst_5 = arith.constant 1.250000e-01 : f32
    %9 = vector.broadcast %cst_5 : f32 to vector<1x128xf32>
    %10 = arith.mulf %5, %9 : vector<1x128xf32>
    %cst_6 = arith.constant 1.250000e-01 : f32
    %11 = vector.broadcast %cst_6 : f32 to vector<1x128xf32>
    %12 = arith.mulf %8, %11 : vector<1x128xf32>
    %13 = arith.mulf %10, %10 : vector<1x128xf32>
    %14 = arith.subf %12, %13 : vector<1x128xf32>
    %cst_7 = arith.constant 0.000000e+00 : f32
    %15 = vector.broadcast %cst_7 : f32 to vector<1x128xf32>
    %16 = arith.maximumf %14, %15 : vector<1x128xf32>
    %c0_8 = arith.constant 0 : index
    %c0_9 = arith.constant 0 : index
    %17 = vector.load %arg2[%c0_8, %c0_9] : memref<9x256xf32, #tpu.memory_space<vmem>>, vector<1x128xf32>
    %c1 = arith.constant 1 : index
    %c0_10 = arith.constant 0 : index
    %18 = vector.load %arg2[%c1, %c0_10] : memref<9x256xf32, #tpu.memory_space<vmem>>, vector<1x128xf32>
    %cst_11 = arith.constant 9.99999974E-6 : f32
    %19 = vector.broadcast %cst_11 : f32 to vector<1x128xf32>
    %20 = arith.addf %16, %19 : vector<1x128xf32>
    %21 = math.rsqrt %20 : vector<1x128xf32>
    %22 = arith.mulf %17, %21 : vector<1x128xf32>
    %23 = arith.mulf %10, %22 : vector<1x128xf32>
    %24 = arith.subf %18, %23 : vector<1x128xf32>
    %25 = vector.broadcast %22 : vector<1x128xf32> to vector<8x128xf32>
    %26 = arith.mulf %3, %25 : vector<8x128xf32>
    %27 = vector.broadcast %24 : vector<1x128xf32> to vector<8x128xf32>
    %28 = arith.addf %26, %27 : vector<8x128xf32>
    %cst_12 = arith.constant 0.000000e+00 : f32
    %29 = vector.broadcast %cst_12 : f32 to vector<8x128xf32>
    %30 = arith.maximumf %28, %29 : vector<8x128xf32>
    %c32 = arith.constant 32 : index
    %c0_13 = arith.constant 0 : index
    %31 = vector.load %arg1[%c32, %c0_13] : memref<672x256xbf16, #tpu.memory_space<vmem>>, vector<128x256xbf16>
    %32 = arith.truncf %30 : vector<8x128xf32> to vector<8x128xbf16>
    %cst_14 = arith.constant dense<0.000000e+00> : vector<8x256xf32>
    %33 = tpu.matmul %32, %31, %cst_14 {dimension_numbers = #tpu.dot_dimension_numbers<[1], [0], [0], [1], [0, 0, 1, 1], [], []>} : vector<8x128xbf16>, vector<128x256xbf16>, vector<8x256xf32> -> vector<8x256xf32>
    %cst_15 = arith.constant dense<0.000000e+00> : vector<256xf32>
    %34 = vector.multi_reduction <add>, %33, %cst_15 [0] : vector<8x256xf32> to vector<256xf32>
    %35 = vector.shape_cast %34 : vector<256xf32> to vector<1x256xf32>
    %36 = arith.mulf %33, %33 : vector<8x256xf32>
    %cst_16 = arith.constant dense<0.000000e+00> : vector<256xf32>
    %37 = vector.multi_reduction <add>, %36, %cst_16 [0] : vector<8x256xf32> to vector<256xf32>
    %38 = vector.shape_cast %37 : vector<256xf32> to vector<1x256xf32>
    %cst_17 = arith.constant 1.250000e-01 : f32
    %39 = vector.broadcast %cst_17 : f32 to vector<1x256xf32>
    %40 = arith.mulf %35, %39 : vector<1x256xf32>
    %cst_18 = arith.constant 1.250000e-01 : f32
    %41 = vector.broadcast %cst_18 : f32 to vector<1x256xf32>
    %42 = arith.mulf %38, %41 : vector<1x256xf32>
    %43 = arith.mulf %40, %40 : vector<1x256xf32>
    %44 = arith.subf %42, %43 : vector<1x256xf32>
    %cst_19 = arith.constant 0.000000e+00 : f32
    %45 = vector.broadcast %cst_19 : f32 to vector<1x256xf32>
    %46 = arith.maximumf %44, %45 : vector<1x256xf32>
    %c2 = arith.constant 2 : index
    %c0_20 = arith.constant 0 : index
    %47 = vector.load %arg2[%c2, %c0_20] : memref<9x256xf32, #tpu.memory_space<vmem>>, vector<1x256xf32>
    %c3 = arith.constant 3 : index
    %c0_21 = arith.constant 0 : index
    %48 = vector.load %arg2[%c3, %c0_21] : memref<9x256xf32, #tpu.memory_space<vmem>>, vector<1x256xf32>
    %cst_22 = arith.constant 9.99999974E-6 : f32
    %49 = vector.broadcast %cst_22 : f32 to vector<1x256xf32>
    %50 = arith.addf %46, %49 : vector<1x256xf32>
    %51 = math.rsqrt %50 : vector<1x256xf32>
    %52 = arith.mulf %47, %51 : vector<1x256xf32>
    %53 = arith.mulf %40, %52 : vector<1x256xf32>
    %54 = arith.subf %48, %53 : vector<1x256xf32>
    %55 = vector.broadcast %52 : vector<1x256xf32> to vector<8x256xf32>
    %56 = arith.mulf %33, %55 : vector<8x256xf32>
    %57 = vector.broadcast %54 : vector<1x256xf32> to vector<8x256xf32>
    %58 = arith.addf %56, %57 : vector<8x256xf32>
    %cst_23 = arith.constant 0.000000e+00 : f32
    %59 = vector.broadcast %cst_23 : f32 to vector<8x256xf32>
    %60 = arith.maximumf %58, %59 : vector<8x256xf32>
    %c160 = arith.constant 160 : index
    %c0_24 = arith.constant 0 : index
    %61 = vector.load %arg1[%c160, %c0_24] : memref<672x256xbf16, #tpu.memory_space<vmem>>, vector<256x128xbf16>
    %62 = arith.truncf %60 : vector<8x256xf32> to vector<8x256xbf16>
    %cst_25 = arith.constant dense<0.000000e+00> : vector<8x128xf32>
    %63 = tpu.matmul %62, %61, %cst_25 {dimension_numbers = #tpu.dot_dimension_numbers<[1], [0], [0], [1], [0, 0, 1, 1], [], []>} : vector<8x256xbf16>, vector<256x128xbf16>, vector<8x128xf32> -> vector<8x128xf32>
    %cst_26 = arith.constant dense<0.000000e+00> : vector<128xf32>
    %64 = vector.multi_reduction <add>, %63, %cst_26 [0] : vector<8x128xf32> to vector<128xf32>
    %65 = vector.shape_cast %64 : vector<128xf32> to vector<1x128xf32>
    %66 = arith.mulf %63, %63 : vector<8x128xf32>
    %cst_27 = arith.constant dense<0.000000e+00> : vector<128xf32>
    %67 = vector.multi_reduction <add>, %66, %cst_27 [0] : vector<8x128xf32> to vector<128xf32>
    %68 = vector.shape_cast %67 : vector<128xf32> to vector<1x128xf32>
    %cst_28 = arith.constant 1.250000e-01 : f32
    %69 = vector.broadcast %cst_28 : f32 to vector<1x128xf32>
    %70 = arith.mulf %65, %69 : vector<1x128xf32>
    %cst_29 = arith.constant 1.250000e-01 : f32
    %71 = vector.broadcast %cst_29 : f32 to vector<1x128xf32>
    %72 = arith.mulf %68, %71 : vector<1x128xf32>
    %73 = arith.mulf %70, %70 : vector<1x128xf32>
    %74 = arith.subf %72, %73 : vector<1x128xf32>
    %cst_30 = arith.constant 0.000000e+00 : f32
    %75 = vector.broadcast %cst_30 : f32 to vector<1x128xf32>
    %76 = arith.maximumf %74, %75 : vector<1x128xf32>
    %c4 = arith.constant 4 : index
    %c0_31 = arith.constant 0 : index
    %77 = vector.load %arg2[%c4, %c0_31] : memref<9x256xf32, #tpu.memory_space<vmem>>, vector<1x128xf32>
    %c5 = arith.constant 5 : index
    %c0_32 = arith.constant 0 : index
    %78 = vector.load %arg2[%c5, %c0_32] : memref<9x256xf32, #tpu.memory_space<vmem>>, vector<1x128xf32>
    %cst_33 = arith.constant 9.99999974E-6 : f32
    %79 = vector.broadcast %cst_33 : f32 to vector<1x128xf32>
    %80 = arith.addf %76, %79 : vector<1x128xf32>
    %81 = math.rsqrt %80 : vector<1x128xf32>
    %82 = arith.mulf %77, %81 : vector<1x128xf32>
    %83 = arith.mulf %70, %82 : vector<1x128xf32>
    %84 = arith.subf %78, %83 : vector<1x128xf32>
    %85 = vector.broadcast %82 : vector<1x128xf32> to vector<8x128xf32>
    %86 = arith.mulf %63, %85 : vector<8x128xf32>
    %87 = vector.broadcast %84 : vector<1x128xf32> to vector<8x128xf32>
    %88 = arith.addf %86, %87 : vector<8x128xf32>
    %cst_34 = arith.constant 0.000000e+00 : f32
    %89 = vector.broadcast %cst_34 : f32 to vector<8x128xf32>
    %90 = arith.maximumf %88, %89 : vector<8x128xf32>
    %c416 = arith.constant 416 : index
    %c0_35 = arith.constant 0 : index
    %91 = vector.load %arg1[%c416, %c0_35] : memref<672x256xbf16, #tpu.memory_space<vmem>>, vector<128x128xbf16>
    %92 = arith.truncf %90 : vector<8x128xf32> to vector<8x128xbf16>
    %cst_36 = arith.constant dense<0.000000e+00> : vector<8x128xf32>
    %93 = tpu.matmul %92, %91, %cst_36 {dimension_numbers = #tpu.dot_dimension_numbers<[1], [0], [0], [1], [0, 0, 1, 1], [], []>} : vector<8x128xbf16>, vector<128x128xbf16>, vector<8x128xf32> -> vector<8x128xf32>
    %cst_37 = arith.constant dense<0.000000e+00> : vector<128xf32>
    %94 = vector.multi_reduction <add>, %93, %cst_37 [0] : vector<8x128xf32> to vector<128xf32>
    %95 = vector.shape_cast %94 : vector<128xf32> to vector<1x128xf32>
    %96 = arith.mulf %93, %93 : vector<8x128xf32>
    %cst_38 = arith.constant dense<0.000000e+00> : vector<128xf32>
    %97 = vector.multi_reduction <add>, %96, %cst_38 [0] : vector<8x128xf32> to vector<128xf32>
    %98 = vector.shape_cast %97 : vector<128xf32> to vector<1x128xf32>
    %cst_39 = arith.constant 1.250000e-01 : f32
    %99 = vector.broadcast %cst_39 : f32 to vector<1x128xf32>
    %100 = arith.mulf %95, %99 : vector<1x128xf32>
    %cst_40 = arith.constant 1.250000e-01 : f32
    %101 = vector.broadcast %cst_40 : f32 to vector<1x128xf32>
    %102 = arith.mulf %98, %101 : vector<1x128xf32>
    %103 = arith.mulf %100, %100 : vector<1x128xf32>
    %104 = arith.subf %102, %103 : vector<1x128xf32>
    %cst_41 = arith.constant 0.000000e+00 : f32
    %105 = vector.broadcast %cst_41 : f32 to vector<1x128xf32>
    %106 = arith.maximumf %104, %105 : vector<1x128xf32>
    %c6 = arith.constant 6 : index
    %c0_42 = arith.constant 0 : index
    %107 = vector.load %arg2[%c6, %c0_42] : memref<9x256xf32, #tpu.memory_space<vmem>>, vector<1x128xf32>
    %c7 = arith.constant 7 : index
    %c0_43 = arith.constant 0 : index
    %108 = vector.load %arg2[%c7, %c0_43] : memref<9x256xf32, #tpu.memory_space<vmem>>, vector<1x128xf32>
    %cst_44 = arith.constant 9.99999974E-6 : f32
    %109 = vector.broadcast %cst_44 : f32 to vector<1x128xf32>
    %110 = arith.addf %106, %109 : vector<1x128xf32>
    %111 = math.rsqrt %110 : vector<1x128xf32>
    %112 = arith.mulf %107, %111 : vector<1x128xf32>
    %113 = arith.mulf %100, %112 : vector<1x128xf32>
    %114 = arith.subf %108, %113 : vector<1x128xf32>
    %115 = vector.broadcast %112 : vector<1x128xf32> to vector<8x128xf32>
    %116 = arith.mulf %93, %115 : vector<8x128xf32>
    %117 = vector.broadcast %114 : vector<1x128xf32> to vector<8x128xf32>
    %118 = arith.addf %116, %117 : vector<8x128xf32>
    %cst_45 = arith.constant 0.000000e+00 : f32
    %119 = vector.broadcast %cst_45 : f32 to vector<8x128xf32>
    %120 = arith.maximumf %118, %119 : vector<8x128xf32>
    %c544 = arith.constant 544 : index
    %c0_46 = arith.constant 0 : index
    %121 = vector.load %arg1[%c544, %c0_46] : memref<672x256xbf16, #tpu.memory_space<vmem>>, vector<128x128xbf16>
    %c8 = arith.constant 8 : index
    %c0_47 = arith.constant 0 : index
    %122 = vector.load %arg2[%c8, %c0_47] : memref<9x256xf32, #tpu.memory_space<vmem>>, vector<1x128xf32>
    %123 = arith.truncf %120 : vector<8x128xf32> to vector<8x128xbf16>
    %cst_48 = arith.constant dense<0.000000e+00> : vector<8x128xf32>
    %124 = tpu.matmul %123, %121, %cst_48 {dimension_numbers = #tpu.dot_dimension_numbers<[1], [0], [0], [1], [0, 0, 1, 1], [], []>} : vector<8x128xbf16>, vector<128x128xbf16>, vector<8x128xf32> -> vector<8x128xf32>
    %125 = vector.broadcast %122 : vector<1x128xf32> to vector<8x128xf32>
    %126 = arith.addf %124, %125 : vector<8x128xf32>
    %c0_49 = arith.constant 0 : index
    %c0_50 = arith.constant 0 : index
    %127 = vector.load %arg3[%c0_49, %c0_50] : memref<8x128xf32, #tpu.memory_space<vmem>>, vector<8x128xf32>
    tpu.vector_store %arg3[%c0_49, %c0_50], %126 {strides = array<i32>} : memref<8x128xf32, #tpu.memory_space<vmem>>, vector<8x128xf32>,
    return
  }
}

</mosaic_0001>

<llo_original>
// kernel: tpu_custom_call.1
$region0: #{tpu_custom_call.1}
  #allocation0 [shape = 'u32[]', space=smem, size = 0x4, offset = 0x4, fixed_abs, tag = 'smem constant byte address 0x4 - core index']
  #allocation1 [shape = 'u32[72,128]{1,0:T(1,128)}', space=vmem, size = 0x9000, scoped, tag = 'internal scratch']
  %s0 = inlined_call_operand.hbm [shape: f32[8,20], index: 0, kind: input, shape index: {}]
  %s1 = inlined_call_operand.hbm [shape: bf16[672,256], index: 1, kind: input, shape index: {}]
  %s2 = inlined_call_operand.hbm [shape: f32[9,256], index: 2, kind: input, shape index: {}]
  %s3 = inlined_call_operand.hbm [shape: f32[8,128], index: 3, kind: output, shape index: {}]
  %s4 = sld [smem:[#allocation0]]
  $region34: #{tpu_custom_call.1} parent=0
    _
  %s6 = ssub.s32 1, %s4
  %s7 = scalar_select 0, %s6, %s4
  $region1: #{tpu_custom_call.1} parent=0
    #allocation2 [shape = 'u8[4096]{0}', space=vmem, size = 0x1000, scoped, tag = 'input window, operand 0, single buffered']
    #allocation3 [shape = 's32[1]{0}', space=sflag, size = 0x4, scoped, tag = 'scoped memory for tpu_custom_call.1']
    #allocation4 [shape = 's32[1]{0}', space=sflag, size = 0x4, scoped, tag = 'scoped memory for tpu_custom_call.1']
    #allocation5 [shape = 'u8[344064]{0}', space=vmem, size = 0x54000, scoped, tag = 'input window, operand 1, single buffered']
    #allocation6 [shape = 's32[1]{0}', space=sflag, size = 0x4, scoped, tag = 'scoped memory for tpu_custom_call.1']
    #allocation7 [shape = 'u8[16384]{0}', space=vmem, size = 0x4000, scoped, tag = 'input window, operand 2, single buffered']
    #allocation8 [shape = 'u8[4096]{0}', space=vmem, size = 0x1000, scoped, tag = 'output window, operand 0, single buffered']
    %8 = vsyncpa [#allocation3], 0
    %9 = vsyncpa [#allocation6], 0
    %10 = vsyncpa [#allocation4], 0
    // Predicated region
    $region2: #{tpu_custom_call.1} parent=1 // pred_check
      _
    $region3: #{tpu_custom_call.1} parent=1 // pred_check_branch
      %12 = sbr.rel (0) target = $region5
    $region4: #{tpu_custom_call.1} parent=1 // pred_region
      %14 = vsyncadd [#allocation3], 0
      %s16 = sshll.u32 %s0, 4
      %s17 = int_to_ptr.hbm [resolvable:$true] %s16
      %s18 = sshll.u32 [#allocation2], 4
      %s19 = int_to_ptr.vmem [resolvable:$true] %s18
      %21 = dma.hbm_to_vmem [thread:$0]  %s17, 128, %s19, [#allocation3]
    $region5: #{tpu_custom_call.1} parent=1 // pred_fallthru
      _
    // Predicated region
    $region6: #{tpu_custom_call.1} parent=1 // pred_check
      _
    $region7: #{tpu_custom_call.1} parent=1 // pred_check_branch
      %23 = sbr.rel (0) target = $region9
    $region8: #{tpu_custom_call.1} parent=1 // pred_region
      %25 = vsyncadd [#allocation6], 0
      %s26 = sshll.u32 %s1, 4
      %s27 = int_to_ptr.hbm [resolvable:$true] %s26
      %s28 = sshll.u32 [#allocation5], 4
      %s29 = int_to_ptr.vmem [resolvable:$true] %s28
      %34 = dma.hbm_to_vmem [thread:$0]  %s27, 10752, %s29, [#allocation6], 128, 128, 8
    $region9: #{tpu_custom_call.1} parent=1 // pred_fallthru
      _
    // Predicated region
    $region10: #{tpu_custom_call.1} parent=1 // pred_check
      _
    $region11: #{tpu_custom_call.1} parent=1 // pred_check_branch
      %36 = sbr.rel (0) target = $region13
    $region12: #{tpu_custom_call.1} parent=1 // pred_region
      %38 = vsyncadd [#allocation6], 0
      %s39 = sshll.u32 %s2, 4
      %s40 = int_to_ptr.hbm [resolvable:$true] %s39
      %s41 = sshll.u32 [#allocation7], 4
      %s42 = int_to_ptr.vmem [resolvable:$true] %s41
      %47 = dma.hbm_to_vmem [thread:$0]  %s40, 512, %s42, [#allocation6], 256, 256, 16
    $region13: #{tpu_custom_call.1} parent=1 // pred_fallthru
      _
    // Predicated region
    $region14: #{tpu_custom_call.1} parent=1 // pred_check
      _
    $region15: #{tpu_custom_call.1} parent=1 // pred_check_branch
      %49 = sbr.rel (0) target = $region17
    $region16: #{tpu_custom_call.1} parent=1 // pred_region
      %51 = dma.done [#allocation3], 128
    $region17: #{tpu_custom_call.1} parent=1 // pred_fallthru
      _
    // Predicated region
    $region18: #{tpu_custom_call.1} parent=1 // pred_check
      _
    $region19: #{tpu_custom_call.1} parent=1 // pred_check_branch
      %53 = sbr.rel (0) target = $region21
    $region20: #{tpu_custom_call.1} parent=1 // pred_region
      %55 = dma.done [#allocation6], 10752
    $region21: #{tpu_custom_call.1} parent=1 // pred_fallthru
      _
    // Predicated region
    $region22: #{tpu_custom_call.1} parent=1 // pred_check
      _
    $region23: #{tpu_custom_call.1} parent=1 // pred_check_branch
      %57 = sbr.rel (0) target = $region25
    $region24: #{tpu_custom_call.1} parent=1 // pred_region
      %59 = dma.done [#allocation6], 512
    $region25: #{tpu_custom_call.1} parent=1 // pred_fallthru
      _
    %v61 = vld [vmem:[#allocation2] sm:$0xff]
    %v62 = vld [vmem:[#allocation5] sm:$0xf]
    %v63 = vld [vmem:[#allocation5 + $0x8] sm:$0xf]
    %v64 = vld [vmem:[#allocation5 + $0x10] sm:$0x3]
    %v65 = vpack.c.bf16 %v61, %v61
    %v69 = vunpack.c.l.b16 %v62
    %v70 = vunpack.c.l.b16 %v63
    %v71 = vunpack.c.l.b16 %v64
    %v72 = vpack.c.b16 %v70, %v69
    %v73 = vpack.c.b16 %v71, %v71
    %vm75 = vcmask 162816
    %v77 = vsel %vm75, %v65, 0
    %vm79 = vcmask 1041408
    %v81 = vsel %vm79, %v73, 0
    %83 = vmatpush.bf16.msra.mxu0 0
    %84 = vmatpush.bf16.msra.mxu0 0
    %85 = vmatpush.bf16.msra.mxu0 0
    %86 = vmatpush.bf16.msra.mxu0 0
    %87 = vmatpush.bf16.msra.mxu0 0
    %88 = vmatpush.bf16.msra.mxu0 0
    %89 = vmatpush.bf16.msra.mxu0 %v81
    %90 = vmatpush.bf16.msra.mxu0 %v72
    %91 = vmatmul.bf16.gmra.mxu0 %v77
    %v92 = vpop.f32.mrf.mxu0
    %v93 = vadd.f32 0.0, %v92
    %v94 = vpop.f32.mrf.mxu0
    %95 = vdwg.mxu0
    %v96 = vrot.slane %v93, 4
    %v97 = vadd.f32 %v93, %v96
    %v98 = vrot.slane %v97, 2
    %v99 = vadd.f32 %v97, %v98
    %v100 = vrot.slane %v99, 1
    %v101 = vadd.f32 %v99, %v100
    %v102 = vmul.f32 %v93, %v93
    %v103 = vrot.slane %v102, 4
    %v104 = vadd.f32 %v102, %v103
    %v105 = vrot.slane %v104, 2
    %v106 = vadd.f32 %v104, %v105
    %v107 = vrot.slane %v106, 1
    %v108 = vadd.f32 %v106, %v107
    %v109 = vmul.f32 %v101, 0.125
    %v110 = vmul.f32 %v108, 0.125
    %v111 = vmul.f32 %v109, %v109
    %v112 = vsub.f32 %v110, %v111
    %v113 = vmax.f32 %v112, 0.0
    %v114 = vld [vmem:[#allocation7] ss:$0 sm:$0xff]
    %v115 = vld [vmem:[#allocation7 + $0x1] ss:$0 sm:$0xff]
    %v116 = vadd.f32 %v113, 1e-05
    %v117 = vrsqrt.pop %v116
    %v118 = vmul.f32 %v117, %v116
    %v119 = vmul.f32 %v118, %v117
    %v120 = vmul.f32 0.5, %v119
    %v121 = vsub.f32 1.5, %v120
    %v122 = vmul.f32 %v117, %v121
    %vm123 = vweird.f32 %v116
    %vm124 = vweird.f32 %v117
    %vm125 = vmor %vm123, %vm124
    %v126 = vsel %vm125, %v117, %v122
    %v127 = vmul.f32 %v114, %v126
    %v128 = vmul.f32 %v109, %v127
    %v129 = vsub.f32 %v115, %v128
    %v130 = vmul.f32 %v93, %v127
    %v131 = vadd.f32 %v130, %v129
    %v132 = vmax.f32 %v131, 0.0
    %v133 = vld [vmem:[#allocation5 + $0x20] sm:$0xff]
    %v134 = vld [vmem:[#allocation5 + $0x28] sm:$0xff]
    %v135 = vld [vmem:[#allocation5 + $0x30] sm:$0xff]
    %v136 = vld [vmem:[#allocation5 + $0x38] sm:$0xff]
    %v137 = vld [vmem:[#allocation5 + $0x40] sm:$0xff]
    %v138 = vld [vmem:[#allocation5 + $0x48] sm:$0xff]
    %v139 = vld [vmem:[#allocation5 + $0x50] sm:$0xff]
    %v140 = vld [vmem:[#allocation5 + $0x58] sm:$0xff]
    %v141 = vld [vmem:[#allocation5 + $0x60] sm:$0xff]
    %v142 = vld [vmem:[#allocation5 + $0x68] sm:$0xff]
    %v143 = vld [vmem:[#allocation5 + $0x70] sm:$0xff]
    %v144 = vld [vmem:[#allocation5 + $0x78] sm:$0xff]
    %v145 = vld [vmem:[#allocation5 + $0x80] sm:$0xff]
    %v146 = vld [vmem:[#allocation5 + $0x88] sm:$0xff]
    %v147 = vld [vmem:[#allocation5 + $0x90] sm:$0xff]
    %v148 = vld [vmem:[#allocation5 + $0x98] sm:$0xff]
    %v149 = vpack.c.bf16 %v132, %v132
    %v166 = vunpack.c.l.b16 %v133
    %v167 = vunpack.c.h.b16 %v133
    %v168 = vunpack.c.l.b16 %v134
    %v169 = vunpack.c.h.b16 %v134
    %v170 = vunpack.c.l.b16 %v135
    %v171 = vunpack.c.h.b16 %v135
    %v172 = vunpack.c.l.b16 %v136
    %v173 = vunpack.c.h.b16 %v136
    %v174 = vunpack.c.l.b16 %v137
    %v175 = vunpack.c.h.b16 %v137
    %v176 = vunpack.c.l.b16 %v138
    %v177 = vunpack.c.h.b16 %v138
    %v178 = vunpack.c.l.b16 %v139
    %v179 = vunpack.c.h.b16 %v139
    %v180 = vunpack.c.l.b16 %v140
    %v181 = vunpack.c.h.b16 %v140
    %v182 = vunpack.c.l.b16 %v141
    %v183 = vunpack.c.h.b16 %v141
    %v184 = vunpack.c.l.b16 %v142
    %v185 = vunpack.c.h.b16 %v142
    %v186 = vunpack.c.l.b16 %v143
    %v187 = vunpack.c.h.b16 %v143
    %v188 = vunpack.c.l.b16 %v144
    %v189 = vunpack.c.h.b16 %v144
    %v190 = vunpack.c.l.b16 %v145
    %v191 = vunpack.c.h.b16 %v145
    %v192 = vunpack.c.l.b16 %v146
    %v193 = vunpack.c.h.b16 %v146
    %v194 = vunpack.c.l.b16 %v147
    %v195 = vunpack.c.h.b16 %v147
    %v196 = vunpack.c.l.b16 %v148
    %v197 = vunpack.c.h.b16 %v148
    %v198 = vpack.c.b16 %v168, %v166
    %v199 = vpack.c.b16 %v169, %v167
    %v200 = vpack.c.b16 %v172, %v170
    %v201 = vpack.c.b16 %v173, %v171
    %v202 = vpack.c.b16 %v176, %v174
    %v203 = vpack.c.b16 %v177, %v175
    %v204 = vpack.c.b16 %v180, %v178
    %v205 = vpack.c.b16 %v181, %v179
    %v206 = vpack.c.b16 %v184, %v182
    %v207 = vpack.c.b16 %v185, %v183
    %v208 = vpack.c.b16 %v188, %v186
    %v209 = vpack.c.b16 %v189, %v187
    %v210 = vpack.c.b16 %v192, %v190
    %v211 = vpack.c.b16 %v193, %v191
    %v212 = vpack.c.b16 %v196, %v194
    %v213 = vpack.c.b16 %v197, %v195
    %230 = vmatpush.bf16.msra.mxu0 %v212
    %231 = vmatpush.bf16.msra.mxu0 %v210
    %232 = vmatpush.bf16.msra.mxu0 %v208
    %233 = vmatpush.bf16.msra.mxu0 %v206
    %234 = vmatpush.bf16.msra.mxu0 %v204
    %235 = vmatpush.bf16.msra.mxu0 %v202
    %236 = vmatpush.bf16.msra.mxu0 %v200
    %237 = vmatpush.bf16.msra.mxu0 %v198
    %238 = vmatmul.bf16.gmra.mxu0 %v149
    %v239 = vpop.f32.mrf.mxu0
    %v240 = vadd.f32 0.0, %v239
    %v241 = vpop.f32.mrf.mxu0
    %242 = vdwg.mxu0
    %243 = vmatpush.bf16.msra.mxu0 %v213
    %244 = vmatpush.bf16.msra.mxu0 %v211
    %245 = vmatpush.bf16.msra.mxu0 %v209
    %246 = vmatpush.bf16.msra.mxu0 %v207
    %247 = vmatpush.bf16.msra.mxu0 %v205
    %248 = vmatpush.bf16.msra.mxu0 %v203
    %249 = vmatpush.bf16.msra.mxu0 %v201
    %250 = vmatpush.bf16.msra.mxu0 %v199
    %251 = vmatmul.bf16.gmra.mxu0 %v149
    %v252 = vpop.f32.mrf.mxu0
    %v253 = vadd.f32 0.0, %v252
    %v254 = vpop.f32.mrf.mxu0
    %255 = vdwg.mxu0
    %v256 = vrot.slane %v240, 4
    %v257 = vadd.f32 %v240, %v256
    %v258 = vrot.slane %v257, 2
    %v259 = vadd.f32 %v257, %v258
    %v260 = vrot.slane %v259, 1
    %v261 = vadd.f32 %v259, %v260
    %v262 = vrot.slane %v253, 4
    %v263 = vadd.f32 %v253, %v262
    %v264 = vrot.slane %v263, 2
    %v265 = vadd.f32 %v263, %v264
    %v266 = vrot.slane %v265, 1
    %v267 = vadd.f32 %v265, %v266
    %v268 = vmul.f32 %v240, %v240
    %v269 = vmul.f32 %v253, %v253
    %v270 = vrot.slane %v268, 4
    %v271 = vadd.f32 %v268, %v270
    %v272 = vrot.slane %v271, 2
    %v273 = vadd.f32 %v271, %v272
    %v274 = vrot.slane %v273, 1
    %v275 = vadd.f32 %v273, %v274
    %v276 = vrot.slane %v269, 4
    %v277 = vadd.f32 %v269, %v276
    %v278 = vrot.slane %v277, 2
    %v279 = vadd.f32 %v277, %v278
    %v280 = vrot.slane %v279, 1
    %v281 = vadd.f32 %v279, %v280
    %v282 = vmul.f32 %v261, 0.125
    %v283 = vmul.f32 %v267, 0.125
    %v284 = vmul.f32 %v275, 0.125
    %v285 = vmul.f32 %v281, 0.125
    %v286 = vmul.f32 %v282, %v282
    %v287 = vmul.f32 %v283, %v283
    %v288 = vsub.f32 %v284, %v286
    %v289 = vsub.f32 %v285, %v287
    %v290 = vmax.f32 %v288, 0.0
    %v291 = vmax.f32 %v289, 0.0
    %s292 = scalar_lea.vmem [#allocation7], 2
    %v293 = vld [vmem:[%s292] ss:$8 sm:$0x3]
    %s294 = scalar_lea.vmem [#allocation7], 3
    %v295 = vld [vmem:[%s294] ss:$8 sm:$0x3]
    %v296 = vadd.f32 %v290, 1e-05
    %v297 = vadd.f32 %v291, 1e-05
    %v298 = vrsqrt.pop %v296
    %v299 = vmul.f32 %v298, %v296
    %v300 = vmul.f32 %v299, %v298
    %v301 = vmul.f32 0.5, %v300
    %v302 = vsub.f32 1.5, %v301
    %v303 = vmul.f32 %v298, %v302
    %vm304 = vweird.f32 %v296
    %vm305 = vweird.f32 %v298
    %vm306 = vmor %vm304, %vm305
    %v307 = vsel %vm306, %v298, %v303
    %v308 = vrsqrt.pop %v297
    %v309 = vmul.f32 %v308, %v297
    %v310 = vmul.f32 %v309, %v308
    %v311 = vmul.f32 0.5, %v310
    %v312 = vsub.f32 1.5, %v311
    %v313 = vmul.f32 %v308, %v312
    %vm314 = vweird.f32 %v297
    %vm315 = vweird.f32 %v308
    %vm316 = vmor %vm314, %vm315
    %v317 = vsel %vm316, %v308, %v313
    %v320 = vrot.slane %v317, 7
    %vm321 = vcmask 1040384
    %v322 = vsel %vm321, %v307, %v320
    %v324 = vmul.f32 %v293, %v322
    %v326 = vperm.slane %v324, 0
    %v327 = vperm.slane %v324, 1
    %v330 = vmul.f32 %v282, %v326
    %v331 = vmul.f32 %v283, %v327
    %v334 = vrot.slane %v331, 7
    %v335 = vsel %vm321, %v330, %v334
    %v337 = vsub.f32 %v295, %v335
    %v338 = vmul.f32 %v240, %v326
    %v339 = vmul.f32 %v253, %v327
    %v341 = vperm.slane %v337, 0
    %v342 = vperm.slane %v337, 1
    %v345 = vadd.f32 %v338, %v341
    %v346 = vadd.f32 %v339, %v342
    %v347 = vmax.f32 %v345, 0.0
    %v348 = vmax.f32 %v346, 0.0
    %v349 = vld [vmem:[#allocation5 + $0xa0] sm:$0xf]
    %v350 = vld [vmem:[#allocation5 + $0xa8] sm:$0xf]
    %v351 = vld [vmem:[#allocation5 + $0xb0] sm:$0xf]
    %v352 = vld [vmem:[#allocation5 + $0xb8] sm:$0xf]
    %v353 = vld [vmem:[#allocation5 + $0xc0] sm:$0xf]
    %v354 = vld [vmem:[#allocation5 + $0xc8] sm:$0xf]
    %v355 = vld [vmem:[#allocation5 + $0xd0] sm:$0xf]
    %v356 = vld [vmem:[#allocation5 + $0xd8] sm:$0xf]
    %v357 = vld [vmem:[#allocation5 + $0xe0] sm:$0xf]
    %v358 = vld [vmem:[#allocation5 + $0xe8] sm:$0xf]
    %v359 = vld [vmem:[#allocation5 + $0xf0] sm:$0xf]
    %v360 = vld [vmem:[#allocation5 + $0xf8] sm:$0xf]
    %v361 = vld [vmem:[#allocation5 + $0x100] sm:$0xf]
    %v362 = vld [vmem:[#allocation5 + $0x108] sm:$0xf]
    %v363 = vld [vmem:[#allocation5 + $0x110] sm:$0xf]
    %v364 = vld [vmem:[#allocation5 + $0x118] sm:$0xf]
    %v365 = vld [vmem:[#allocation5 + $0x120] sm:$0xf]
    %v366 = vld [vmem:[#allocation5 + $0x128] sm:$0xf]
    %v367 = vld [vmem:[#allocation5 + $0x130] sm:$0xf]
    %v368 = vld [vmem:[#allocation5 + $0x138] sm:$0xf]
    %v369 = vld [vmem:[#allocation5 + $0x140] sm:$0xf]
    %v370 = vld [vmem:[#allocation5 + $0x148] sm:$0xf]
    %v371 = vld [vmem:[#allocation5 + $0x150] sm:$0xf]
    %v372 = vld [vmem:[#allocation5 + $0x158] sm:$0xf]
    %v373 = vld [vmem:[#allocation5 + $0x160] sm:$0xf]
    %v374 = vld [vmem:[#allocation5 + $0x168] sm:$0xf]
    %v375 = vld [vmem:[#allocation5 + $0x170] sm:$0xf]
    %v376 = vld [vmem:[#allocation5 + $0x178] sm:$0xf]
    %v377 = vld [vmem:[#allocation5 + $0x180] sm:$0xf]
    %v378 = vld [vmem:[#allocation5 + $0x188] sm:$0xf]
    %v379 = vld [vmem:[#allocation5 + $0x190] sm:$0xf]
    %v380 = vld [vmem:[#allocation5 + $0x198] sm:$0xf]
    %v381 = vpack.c.bf16 %v347, %v347
    %v382 = vpack.c.bf16 %v348, %v348
    %v415 = vunpack.c.l.b16 %v349
    %v416 = vunpack.c.l.b16 %v350
    %v417 = vunpack.c.l.b16 %v351
    %v418 = vunpack.c.l.b16 %v352
    %v419 = vunpack.c.l.b16 %v353
    %v420 = vunpack.c.l.b16 %v354
    %v421 = vunpack.c.l.b16 %v355
    %v422 = vunpack.c.l.b16 %v356
    %v423 = vunpack.c.l.b16 %v357
    %v424 = vunpack.c.l.b16 %v358
    %v425 = vunpack.c.l.b16 %v359
    %v426 = vunpack.c.l.b16 %v360
    %v427 = vunpack.c.l.b16 %v361
    %v428 = vunpack.c.l.b16 %v362
    %v429 = vunpack.c.l.b16 %v363
    %v430 = vunpack.c.l.b16 %v364
    %v431 = vunpack.c.l.b16 %v365
    %v432 = vunpack.c.l.b16 %v366
    %v433 = vunpack.c.l.b16 %v367
    %v434 = vunpack.c.l.b16 %v368
    %v435 = vunpack.c.l.b16 %v369
    %v436 = vunpack.c.l.b16 %v370
    %v437 = vunpack.c.l.b16 %v371
    %v438 = vunpack.c.l.b16 %v372
    %v439 = vunpack.c.l.b16 %v373
    %v440 = vunpack.c.l.b16 %v374
    %v441 = vunpack.c.l.b16 %v375
    %v442 = vunpack.c.l.b16 %v376
    %v443 = vunpack.c.l.b16 %v377
    %v444 = vunpack.c.l.b16 %v378
    %v445 = vunpack.c.l.b16 %v379
    %v446 = vunpack.c.l.b16 %v380
    %v447 = vpack.c.b16 %v416, %v415
    %v448 = vpack.c.b16 %v418, %v417
    %v449 = vpack.c.b16 %v420, %v419
    %v450 = vpack.c.b16 %v422, %v421
    %v451 = vpack.c.b16 %v424, %v423
    %v452 = vpack.c.b16 %v426, %v425
    %v453 = vpack.c.b16 %v428, %v427
    %v454 = vpack.c.b16 %v430, %v429
    %v455 = vpack.c.b16 %v432, %v431
    %v456 = vpack.c.b16 %v434, %v433
    %v457 = vpack.c.b16 %v436, %v435
    %v458 = vpack.c.b16 %v438, %v437
    %v459 = vpack.c.b16 %v440, %v439
    %v460 = vpack.c.b16 %v442, %v441
    %v461 = vpack.c.b16 %v444, %v443
    %v462 = vpack.c.b16 %v446, %v445
    %479 = vmatpush.bf16.msra.mxu0 %v454
    %480 = vmatpush.bf16.msra.mxu0 %v453
    %481 = vmatpush.bf16.msra.mxu0 %v452
    %482 = vmatpush.bf16.msra.mxu0 %v451
    %483 = vmatpush.bf16.msra.mxu0 %v450
    %484 = vmatpush.bf16.msra.mxu0 %v449
    %485 = vmatpush.bf16.msra.mxu0 %v448
    %486 = vmatpush.bf16.msra.mxu0 %v447
    %487 = vmatmul.bf16.gmra.mxu0 %v381
    %v488 = vpop.f32.mrf.mxu0
    %v489 = vadd.f32 0.0, %v488
    %v490 = vpop.f32.mrf.mxu0
    %491 = vdwg.mxu0
    %492 = vmatpush.bf16.msra.mxu0 %v462
    %493 = vmatpush.bf16.msra.mxu0 %v461
    %494 = vmatpush.bf16.msra.mxu0 %v460
    %495 = vmatpush.bf16.msra.mxu0 %v459
    %496 = vmatpush.bf16.msra.mxu0 %v458
    %497 = vmatpush.bf16.msra.mxu0 %v457
    %498 = vmatpush.bf16.msra.mxu0 %v456
    %499 = vmatpush.bf16.msra.mxu0 %v455
    %500 = vmatmul.bf16.gmra.mxu0 %v382
    %v501 = vpop.f32.mrf.mxu0
    %v502 = vadd.f32 %v489, %v501
    %v503 = vpop.f32.mrf.mxu0
    %504 = vdwg.mxu0
    %v505 = vrot.slane %v502, 4
    %v506 = vadd.f32 %v502, %v505
    %v507 = vrot.slane %v506, 2
    %v508 = vadd.f32 %v506, %v507
    %v509 = vrot.slane %v508, 1
    %v510 = vadd.f32 %v508, %v509
    %v511 = vmul.f32 %v502, %v502
    %v512 = vrot.slane %v511, 4
    %v513 = vadd.f32 %v511, %v512
    %v514 = vrot.slane %v513, 2
    %v515 = vadd.f32 %v513, %v514
    %v516 = vrot.slane %v515, 1
    %v517 = vadd.f32 %v515, %v516
    %v518 = vmul.f32 %v510, 0.125
    %v519 = vmul.f32 %v517, 0.125
    %v520 = vmul.f32 %v518, %v518
    %v521 = vsub.f32 %v519, %v520
    %v522 = vmax.f32 %v521, 0.0
    %v523 = vld [vmem:[#allocation7 + $0x4] ss:$0 sm:$0xff]
    %v524 = vld [vmem:[#allocation7 + $0x5] ss:$0 sm:$0xff]
    %v525 = vadd.f32 %v522, 1e-05
    %v526 = vrsqrt.pop %v525
    %v527 = vmul.f32 %v526, %v525
    %v528 = vmul.f32 %v527, %v526
    %v529 = vmul.f32 0.5, %v528
    %v530 = vsub.f32 1.5, %v529
    %v531 = vmul.f32 %v526, %v530
    %vm532 = vweird.f32 %v525
    %vm533 = vweird.f32 %v526
    %vm534 = vmor %vm532, %vm533
    %v535 = vsel %vm534, %v526, %v531
    %v536 = vmul.f32 %v523, %v535
    %v537 = vmul.f32 %v518, %v536
    %v538 = vsub.f32 %v524, %v537
    %v539 = vmul.f32 %v502, %v536
    %v540 = vadd.f32 %v539, %v538
    %v541 = vmax.f32 %v540, 0.0
    %v542 = vld [vmem:[#allocation5 + $0x1a0] sm:$0xf]
    %v543 = vld [vmem:[#allocation5 + $0x1a8] sm:$0xf]
    %v544 = vld [vmem:[#allocation5 + $0x1b0] sm:$0xf]
    %v545 = vld [vmem:[#allocation5 + $0x1b8] sm:$0xf]
    %v546 = vld [vmem:[#allocation5 + $0x1c0] sm:$0xf]
    %v547 = vld [vmem:[#allocation5 + $0x1c8] sm:$0xf]
    %v548 = vld [vmem:[#allocation5 + $0x1d0] sm:$0xf]
    %v549 = vld [vmem:[#allocation5 + $0x1d8] sm:$0xf]
    %v550 = vld [vmem:[#allocation5 + $0x1e0] sm:$0xf]
    %v551 = vld [vmem:[#allocation5 + $0x1e8] sm:$0xf]
    %v552 = vld [vmem:[#allocation5 + $0x1f0] sm:$0xf]
    %v553 = vld [vmem:[#allocation5 + $0x1f8] sm:$0xf]
    %v554 = vld [vmem:[#allocation5 + $0x200] sm:$0xf]
    %v555 = vld [vmem:[#allocation5 + $0x208] sm:$0xf]
    %v556 = vld [vmem:[#allocation5 + $0x210] sm:$0xf]
    %v557 = vld [vmem:[#allocation5 + $0x218] sm:$0xf]
    %v558 = vpack.c.bf16 %v541, %v541
    %v575 = vunpack.c.l.b16 %v542
    %v576 = vunpack.c.l.b16 %v543
    %v577 = vunpack.c.l.b16 %v544
    %v578 = vunpack.c.l.b16 %v545
    %v579 = vunpack.c.l.b16 %v546
    %v580 = vunpack.c.l.b16 %v547
    %v581 = vunpack.c.l.b16 %v548
    %v582 = vunpack.c.l.b16 %v549
    %v583 = vunpack.c.l.b16 %v550
    %v584 = vunpack.c.l.b16 %v551
    %v585 = vunpack.c.l.b16 %v552
    %v586 = vunpack.c.l.b16 %v553
    %v587 = vunpack.c.l.b16 %v554
    %v588 = vunpack.c.l.b16 %v555
    %v589 = vunpack.c.l.b16 %v556
    %v590 = vunpack.c.l.b16 %v557
    %v591 = vpack.c.b16 %v576, %v575
    %v592 = vpack.c.b16 %v578, %v577
    %v593 = vpack.c.b16 %v580, %v579
    %v594 = vpack.c.b16 %v582, %v581
    %v595 = vpack.c.b16 %v584, %v583
    %v596 = vpack.c.b16 %v586, %v585
    %v597 = vpack.c.b16 %v588, %v587
    %v598 = vpack.c.b16 %v590, %v589
    %607 = vmatpush.bf16.msra.mxu0 %v598
    %608 = vmatpush.bf16.msra.mxu0 %v597
    %609 = vmatpush.bf16.msra.mxu0 %v596
    %610 = vmatpush.bf16.msra.mxu0 %v595
    %611 = vmatpush.bf16.msra.mxu0 %v594
    %612 = vmatpush.bf16.msra.mxu0 %v593
    %613 = vmatpush.bf16.msra.mxu0 %v592
    %614 = vmatpush.bf16.msra.mxu0 %v591
    %615 = vmatmul.bf16.gmra.mxu0 %v558
    %v616 = vpop.f32.mrf.mxu0
    %v617 = vadd.f32 0.0, %v616
    %v618 = vpop.f32.mrf.mxu0
    %619 = vdwg.mxu0
    %v620 = vrot.slane %v617, 4
    %v621 = vadd.f32 %v617, %v620
    %v622 = vrot.slane %v621, 2
    %v623 = vadd.f32 %v621, %v622
    %v624 = vrot.slane %v623, 1
    %v625 = vadd.f32 %v623, %v624
    %v626 = vmul.f32 %v617, %v617
    %v627 = vrot.slane %v626, 4
    %v628 = vadd.f32 %v626, %v627
    %v629 = vrot.slane %v628, 2
    %v630 = vadd.f32 %v628, %v629
    %v631 = vrot.slane %v630, 1
    %v632 = vadd.f32 %v630, %v631
    %v633 = vmul.f32 %v625, 0.125
    %v634 = vmul.f32 %v632, 0.125
    %v635 = vmul.f32 %v633, %v633
    %v636 = vsub.f32 %v634, %v635
    %v637 = vmax.f32 %v636, 0.0
    %v638 = vld [vmem:[#allocation7 + $0x6] ss:$0 sm:$0xff]
    %v639 = vld [vmem:[#allocation7 + $0x7] ss:$0 sm:$0xff]
    %v640 = vadd.f32 %v637, 1e-05
    %v641 = vrsqrt.pop %v640
    %v642 = vmul.f32 %v641, %v640
    %v643 = vmul.f32 %v642, %v641
    %v644 = vmul.f32 0.5, %v643
    %v645 = vsub.f32 1.5, %v644
    %v646 = vmul.f32 %v641, %v645
    %vm647 = vweird.f32 %v640
    %vm648 = vweird.f32 %v641
    %vm649 = vmor %vm647, %vm648
    %v650 = vsel %vm649, %v641, %v646
    %v651 = vmul.f32 %v638, %v650
    %v652 = vmul.f32 %v633, %v651
    %v653 = vsub.f32 %v639, %v652
    %v654 = vmul.f32 %v617, %v651
    %v655 = vadd.f32 %v654, %v653
    %v656 = vmax.f32 %v655, 0.0
    %v657 = vld [vmem:[#allocation5 + $0x220] sm:$0xf]
    %v658 = vld [vmem:[#allocation5 + $0x228] sm:$0xf]
    %v659 = vld [vmem:[#allocation5 + $0x230] sm:$0xf]
    %v660 = vld [vmem:[#allocation5 + $0x238] sm:$0xf]
    %v661 = vld [vmem:[#allocation5 + $0x240] sm:$0xf]
    %v662 = vld [vmem:[#allocation5 + $0x248] sm:$0xf]
    %v663 = vld [vmem:[#allocation5 + $0x250] sm:$0xf]
    %v664 = vld [vmem:[#allocation5 + $0x258] sm:$0xf]
    %v665 = vld [vmem:[#allocation5 + $0x260] sm:$0xf]
    %v666 = vld [vmem:[#allocation5 + $0x268] sm:$0xf]
    %v667 = vld [vmem:[#allocation5 + $0x270] sm:$0xf]
    %v668 = vld [vmem:[#allocation5 + $0x278] sm:$0xf]
    %v669 = vld [vmem:[#allocation5 + $0x280] sm:$0xf]
    %v670 = vld [vmem:[#allocation5 + $0x288] sm:$0xf]
    %v671 = vld [vmem:[#allocation5 + $0x290] sm:$0xf]
    %v672 = vld [vmem:[#allocation5 + $0x298] sm:$0xf]
    %v673 = vld [vmem:[#allocation7 + $0x10] ss:$0 sm:$0xff]
    %v674 = vpack.c.bf16 %v656, %v656
    %v691 = vunpack.c.l.b16 %v657
    %v692 = vunpack.c.l.b16 %v658
    %v693 = vunpack.c.l.b16 %v659
    %v694 = vunpack.c.l.b16 %v660
    %v695 = vunpack.c.l.b16 %v661
    %v696 = vunpack.c.l.b16 %v662
    %v697 = vunpack.c.l.b16 %v663
    %v698 = vunpack.c.l.b16 %v664
    %v699 = vunpack.c.l.b16 %v665
    %v700 = vunpack.c.l.b16 %v666
    %v701 = vunpack.c.l.b16 %v667
    %v702 = vunpack.c.l.b16 %v668
    %v703 = vunpack.c.l.b16 %v669
    %v704 = vunpack.c.l.b16 %v670
    %v705 = vunpack.c.l.b16 %v671
    %v706 = vunpack.c.l.b16 %v672
    %v707 = vpack.c.b16 %v692, %v691
    %v708 = vpack.c.b16 %v694, %v693
    %v709 = vpack.c.b16 %v696, %v695
    %v710 = vpack.c.b16 %v698, %v697
    %v711 = vpack.c.b16 %v700, %v699
    %v712 = vpack.c.b16 %v702, %v701
    %v713 = vpack.c.b16 %v704, %v703
    %v714 = vpack.c.b16 %v706, %v705
    %723 = vmatpush.bf16.msra.mxu0 %v714
    %724 = vmatpush.bf16.msra.mxu0 %v713
    %725 = vmatpush.bf16.msra.mxu0 %v712
    %726 = vmatpush.bf16.msra.mxu0 %v711
    %727 = vmatpush.bf16.msra.mxu0 %v710
    %728 = vmatpush.bf16.msra.mxu0 %v709
    %729 = vmatpush.bf16.msra.mxu0 %v708
    %730 = vmatpush.bf16.msra.mxu0 %v707
    %731 = vmatmul.bf16.gmra.mxu0 %v674
    %v732 = vpop.f32.mrf.mxu0
    %v733 = vadd.f32 %v673, %v732
    %v734 = vpop.f32.mrf.mxu0
    %735 = vdwg.mxu0
    %736 = vst [vmem:[#allocation8] sm:$0xff] %v733
    // Predicated region
    $region26: #{tpu_custom_call.1} parent=1 // pred_check
      _
    $region27: #{tpu_custom_call.1} parent=1 // pred_check_branch
      %738 = sbr.rel (0) target = $region29
    $region28: #{tpu_custom_call.1} parent=1 // pred_region
      %740 = vsyncadd [#allocation4], 0
      %s742 = sshll.u32 [#allocation8], 4
      %s743 = int_to_ptr.vmem [resolvable:$true] %s742
      %s744 = sshll.u32 %s3, 4
      %s745 = int_to_ptr.hbm [resolvable:$true] %s744
      %747 = dma.vmem_to_hbm [thread:$0]  %s743, 128, %s745, [#allocation4]
    $region29: #{tpu_custom_call.1} parent=1 // pred_fallthru
      _
    // Predicated region
    $region30: #{tpu_custom_call.1} parent=1 // pred_check
      _
    $region31: #{tpu_custom_call.1} parent=1 // pred_check_branch
      %749 = sbr.rel (0) target = $region33
    $region32: #{tpu_custom_call.1} parent=1 // pred_region
      %751 = dma.done [#allocation4], 128
    $region33: #{tpu_custom_call.1} parent=1 // pred_fallthru
      _
    %752 = vsyncpa [#allocation3], 1
    %753 = vsyncpa [#allocation6], 1
    %754 = vsyncpa [#allocation4], 1

</llo_original>
